<compile_context>
chip_gen: v7x
topology: tpu7x:2x2x1
jax: 0.10.0
libtpu: 0.0.40
codegen_flags: <defaults>
</compile_context>

<pallas_src>
import functools

import jax
import jax.numpy as jnp
from jax.experimental import pallas as pl
from jax.experimental.pallas import tpu as pltpu

# Explicit scoped-VMEM limit: >= every generation's default (v5e: 16 MiB) and
# comfortably inside v7x's 64 MiB physical VMEM per TensorCore.
_VMEM_LIMIT_BYTES = 32 * 1024 * 1024
# Slack reserved when sizing the batch tile (compiler temporaries, spills).
_VMEM_SIZING_HEADROOM = 6 * 1024 * 1024


def _sublane_rows(dtype):
    # dtype-aware sublane packing: 8 rows (f32), 16 (bf16), 32 (int8/fp8).
    return max(8, 32 // dtype.itemsize)


def _adapter_kernel(x_ref, w1_ref, w2_ref, o_ref):
    # x_ref : (TB, C)  VMEM, streamed per batch tile
    # w1_ref: (C,  H)  VMEM, resident (constant index_map -> fetched once)
    # w2_ref: (H,  C)  VMEM, resident
    # o_ref : (TB, C)  VMEM
    x = x_ref[...].astype(w1_ref.dtype)             # bf16 weights => bf16 MXU path
    h = jnp.dot(x, w1_ref[...], preferred_element_type=jnp.float32)
    h = jnp.maximum(h, 0.0)                         # ReLU #1 (f32 accumulator)
    y = jnp.dot(h.astype(w2_ref.dtype), w2_ref[...],
                preferred_element_type=jnp.float32)
    o_ref[...] = jnp.maximum(y, 0.0).astype(o_ref.dtype)   # ReLU #2 (f32)


def prepare_adapter_weights(w1, w2, dtype=None):
    """One-time (parameter-init time) weight preparation.

    w1: (H, C) torch Linear layout (out_features, in_features)
    w2: (C, H) torch Linear layout
    Returns (w1_p, w2_p) with shapes (C, H) / (H, C): transposed into x @ W
    form. No padding: full-array weight blocks are legal for any (C, H), and
    typical adapter sizes (C, H multiples of 128) are already lane-dense.
    Pass dtype=jnp.bfloat16 on v6e/v7x to halve weight HBM/VMEM footprint.
    """
    w1_p = jnp.asarray(w1).T          # (C, H)
    w2_p = jnp.asarray(w2).T          # (H, C)
    if dtype is not None:
        w1_p = w1_p.astype(dtype)
        w2_p = w2_p.astype(dtype)
    return w1_p, w2_p


@functools.partial(jax.jit, static_argnames=("block_b",))
def adapter_forward(x, w1_p, w2_p, *, block_b=None):
    """x: (..., C); w1_p: (C, H), w2_p: (H, C) from prepare_adapter_weights."""
    orig_shape = x.shape
    C = orig_shape[-1]
    Cw, H = w1_p.shape
    assert Cw == C and w2_p.shape == (H, C), (w1_p.shape, w2_p.shape, C)

    x2 = x.reshape(-1, C)             # Linear acts on the last dim
    B = x2.shape[0]
    sub = _sublane_rows(x2.dtype)

    # ---- batch-tile size derived from the VMEM budget ----------------------
    # Resident weights are double-buffered by the pipeliner (2x each); the
    # streamed x / out tiles are double-buffered; in-kernel f32 temporaries
    # are h:(TB, H) and y:(TB, C).
    weight_bytes = 2 * (w1_p.size * w1_p.dtype.itemsize
                        + w2_p.size * w2_p.dtype.itemsize)
    per_row_bytes = (2 * 2 * C * x2.dtype.itemsize       # x + out, double-buffered
                     + 4 * (H + C))                       # f32 h + y temporaries
    avail = max(_VMEM_LIMIT_BYTES - _VMEM_SIZING_HEADROOM - weight_bytes, 0)
    tb = max(sub, (avail // per_row_bytes) // sub * sub)
    if block_b is not None:
        tb = max(sub, min(tb, (block_b // sub) * sub))
    # TODO(synk): if the weights alone overflow VMEM (very large C, tiny r),
    # add an 'arbitrary' grid axis over C instead of shrinking the batch tile.

    if B <= tb:
        tb = B                        # single full-batch block (full dim => legal)
    grid = (pl.cdiv(B, tb),)          # ragged last tile handled by Pallas

    out = pl.pallas_call(
        _adapter_kernel,
        out_shape=jax.ShapeDtypeStruct((B, C), x2.dtype),
        grid=grid,
        in_specs=[
            pl.BlockSpec((tb, C), lambda i: (i, 0)),   # x: streamed per batch tile
            pl.BlockSpec((C, H), lambda i: (0, 0)),    # w1: resident in VMEM
            pl.BlockSpec((H, C), lambda i: (0, 0)),    # w2: resident in VMEM
        ],
        out_specs=pl.BlockSpec((tb, C), lambda i: (i, 0)),
        compiler_params=pltpu.CompilerParams(
            dimension_semantics=("parallel",),
            vmem_limit_bytes=_VMEM_LIMIT_BYTES,
        ),
    )(x2, w1_p, w2_p)

    return out.reshape(orig_shape)


if __name__ == "__main__":
    key = jax.random.PRNGKey(0)
    B = 8            # batch of feature vectors
    C = 32           # channel_in
    reduction = 4
    H = C // reduction

    kx, k1, k2 = jax.random.split(key, 3)
    x = jax.random.normal(kx, (B, C), dtype=jnp.float32)
    # torch nn.Linear weight layout: (out_features, in_features)
    w1 = jax.random.normal(k1, (H, C), dtype=jnp.float32) * (1.0 / jnp.sqrt(C))
    w2 = jax.random.normal(k2, (C, H), dtype=jnp.float32) * (1.0 / jnp.sqrt(H))

    # One-time parameter prep (transpose only; use dtype=jnp.bfloat16 on v6e/v7x).
    w1_p, w2_p = prepare_adapter_weights(w1, w2)

    out = adapter_forward(x, w1_p, w2_p)
    out = jax.block_until_ready(out)

    # Reference: same semantics as the PyTorch module.
    ref = jnp.maximum(jnp.maximum(x @ w1.T, 0.0) @ w2.T, 0.0)
    assert out.shape == (B, C)
    assert jnp.allclose(out, ref, atol=1e-4, rtol=1e-4), (
        float(jnp.max(jnp.abs(out - ref))))

    print("KERNEL_OK")
</pallas_src>

<mosaic_0001>
module attributes {stable_mosaic.version = 11 : i64} {
  func.func @_adapter_kernel(%arg0: i32, %arg1: memref<8x32xf32, #tpu.memory_space<vmem>>, %arg2: memref<32x8xf32, #tpu.memory_space<vmem>>, %arg3: memref<8x32xf32, #tpu.memory_space<vmem>>, %arg4: memref<8x32xf32, #tpu.memory_space<vmem>>) attributes {dimension_semantics = [#tpu.dimension_semantics<parallel>], iteration_bounds = array<i64: 1>, scalar_prefetch = 0 : i64, scratch_operands = 0 : i64, tpu.core_type = #tpu.core_type<tc>, window_params = [{transform_indices = @transform_0, window_bounds = array<i64: 8, 32>}, {pipeline_mode = #tpu.pipeline_mode<synchronous>, transform_indices = @transform_1, window_bounds = array<i64: 32, 8>}, {pipeline_mode = #tpu.pipeline_mode<synchronous>, transform_indices = @transform_2, window_bounds = array<i64: 8, 32>}, {transform_indices = @transform_3, window_bounds = array<i64: 8, 32>}]} {
    %c0 = arith.constant 0 : index
    %c0_0 = arith.constant 0 : index
    %0 = vector.load %arg1[%c0, %c0_0] : memref<8x32xf32, #tpu.memory_space<vmem>>, vector<8x32xf32>
    %c0_1 = arith.constant 0 : index
    %c0_2 = arith.constant 0 : index
    %1 = vector.load %arg2[%c0_1, %c0_2] : memref<32x8xf32, #tpu.memory_space<vmem>>, vector<32x8xf32>
    %cst = arith.constant dense<0.000000e+00> : vector<8x8xf32>
    %2 = tpu.matmul %0, %1, %cst {dimension_numbers = #tpu.dot_dimension_numbers<[1], [0], [0], [1], [0, 0, 1, 1], [], []>} : vector<8x32xf32>, vector<32x8xf32>, vector<8x8xf32> -> vector<8x8xf32>
    %cst_3 = arith.constant 0.000000e+00 : f32
    %3 = vector.broadcast %cst_3 : f32 to vector<8x8xf32>
    %4 = arith.maximumf %2, %3 : vector<8x8xf32>
    %c0_4 = arith.constant 0 : index
    %c0_5 = arith.constant 0 : index
    %5 = vector.load %arg3[%c0_4, %c0_5] : memref<8x32xf32, #tpu.memory_space<vmem>>, vector<8x32xf32>
    %cst_6 = arith.constant dense<0.000000e+00> : vector<8x32xf32>
    %6 = tpu.matmul %4, %5, %cst_6 {dimension_numbers = #tpu.dot_dimension_numbers<[1], [0], [0], [1], [0, 0, 1, 1], [], []>} : vector<8x8xf32>, vector<8x32xf32>, vector<8x32xf32> -> vector<8x32xf32>
    %cst_7 = arith.constant 0.000000e+00 : f32
    %7 = vector.broadcast %cst_7 : f32 to vector<8x32xf32>
    %8 = arith.maximumf %6, %7 : vector<8x32xf32>
    %c0_8 = arith.constant 0 : index
    %c0_9 = arith.constant 0 : index
    %9 = vector.load %arg4[%c0_8, %c0_9] : memref<8x32xf32, #tpu.memory_space<vmem>>, vector<8x32xf32>
    tpu.vector_store %arg4[%c0_8, %c0_9], %8 {strides = array<i32>} : memref<8x32xf32, #tpu.memory_space<vmem>>, vector<8x32xf32>,
    return
  }
  func.func @transform_0(%arg0: i32) -> (i32, i32) {
    %c0_i32 = arith.constant 0 : i32
    %c0_i32_0 = arith.constant 0 : i32
    return %arg0, %c0_i32 : i32, i32
  }
  func.func @transform_1(%arg0: i32) -> (i32, i32) {
    %c0_i32 = arith.constant 0 : i32
    %c0_i32_0 = arith.constant 0 : i32
    %c0_i32_1 = arith.constant 0 : i32
    return %c0_i32, %c0_i32_0 : i32, i32
  }
  func.func @transform_2(%arg0: i32) -> (i32, i32) {
    %c0_i32 = arith.constant 0 : i32
    %c0_i32_0 = arith.constant 0 : i32
    %c0_i32_1 = arith.constant 0 : i32
    return %c0_i32, %c0_i32_0 : i32, i32
  }
  func.func @transform_3(%arg0: i32) -> (i32, i32) {
    %c0_i32 = arith.constant 0 : i32
    %c0_i32_0 = arith.constant 0 : i32
    return %arg0, %c0_i32 : i32, i32
  }
}

</mosaic_0001>

<llo_original>
// kernel: adapter_forward.1
$region0: #{adapter_forward.1}
  #allocation0 [shape = 'u32[]', space=smem, size = 0x4, offset = 0x4, fixed_abs, tag = 'smem constant byte address 0x4 - core index']
  #allocation1 [shape = 'u32[144,128]{1,0:T(1,128)}', space=vmem, size = 0x12000, scoped, tag = 'internal scratch']
  %s0 = inlined_call_operand.vmem [shape: f32[8,32], index: 0, kind: input, shape index: {}]
  %s1 = inlined_call_operand.vmem [shape: f32[32,8], index: 1, kind: input, shape index: {}]
  %s2 = inlined_call_operand.vmem [shape: f32[8,32], index: 2, kind: input, shape index: {}]
  %s3 = inlined_call_operand.hbm [shape: f32[8,32], index: 3, kind: output, shape index: {}]
  %s4 = sld [smem:[#allocation0]]
  $region22: #{adapter_forward.1} parent=0
    _
  %s6 = ssub.s32 1, %s4
  %s7 = scalar_select 0, %s6, %s4
  $region1: #{adapter_forward.1} parent=0
    #allocation2 [shape = 'u8[4096]{0}', space=vmem, size = 0x1000, scoped, tag = 'output window, operand 0, single buffered']
    #allocation3 [shape = 's32[1]{0}', space=sflag, size = 0x4, scoped, tag = 'scoped memory for adapter_forward.1']
    %8 = vsyncpa [#allocation3], 0
    // Predicated region
    $region2: #{adapter_forward.1} parent=1 // pred_check
      _
    $region3: #{adapter_forward.1} parent=1 // pred_check_branch
      %10 = sbr.rel (0) target = $region5
    $region4: #{adapter_forward.1} parent=1 // pred_region
      _
    $region5: #{adapter_forward.1} parent=1 // pred_fallthru
      _
    // Predicated region
    $region6: #{adapter_forward.1} parent=1 // pred_check
      _
    $region7: #{adapter_forward.1} parent=1 // pred_check_branch
      %12 = sbr.rel (0) target = $region9
    $region8: #{adapter_forward.1} parent=1 // pred_region
      _
    $region9: #{adapter_forward.1} parent=1 // pred_fallthru
      _
    // Predicated region
    $region10: #{adapter_forward.1} parent=1 // pred_check
      _
    $region11: #{adapter_forward.1} parent=1 // pred_check_branch
      %14 = sbr.rel (0) target = $region13
    $region12: #{adapter_forward.1} parent=1 // pred_region
      _
    $region13: #{adapter_forward.1} parent=1 // pred_fallthru
      _
    %v15 = vld [vmem:[%s0] sm:$0xff]
    %v16 = vld [vmem:[%s1] sm:$0xff]
    %v17 = vld [vmem:[%s1 + $0x8] sm:$0xff]
    %v18 = vld [vmem:[%s1 + $0x10] sm:$0xff]
    %v19 = vld [vmem:[%s1 + $0x18] sm:$0xff]
    %vm20 = vcmask 261120
    %v22 = vsel %vm20, %v15, 0
    %24 = vmatprep.subr.mxu0 0.0
    %25 = vmatpush1.msra.mxu0 %v16
    %26 = vmatprep.subr.mxu0 0.0
    %27 = vmatpush1.msra.mxu0 %v17
    %28 = vmatprep.subr.mxu0 0.0
    %29 = vmatpush1.msra.mxu0 %v18
    %30 = vmatprep.subr.mxu0 0.0
    %31 = vmatpush1.msra.mxu0 %v19
    %32 = vmatprep.subr.mxu0 0.0
    %33 = vmatpush1.msra.mxu0 0.0
    %34 = vmatprep.subr.mxu0 0.0
    %35 = vmatpush1.msra.mxu0 0.0
    %36 = vmatprep.subr.mxu0 0.0
    %37 = vmatpush1.msra.mxu0 0.0
    %38 = vmatprep.subr.mxu0 0.0
    %39 = vmatpush1.msra.mxu0 0.0
    %40 = vmatprep.subr.mxu0 0.0
    %41 = vmatpush1.msra.mxu0 0.0
    %42 = vmatprep.subr.mxu0 0.0
    %43 = vmatpush1.msra.mxu0 0.0
    %44 = vmatprep.subr.mxu0 0.0
    %45 = vmatpush1.msra.mxu0 0.0
    %46 = vmatprep.subr.mxu0 0.0
    %47 = vmatpush1.msra.mxu0 0.0
    %48 = vmatprep.subr.mxu0 0.0
    %49 = vmatpush1.msra.mxu0 0.0
    %50 = vmatprep.subr.mxu0 0.0
    %51 = vmatpush1.msra.mxu0 0.0
    %52 = vmatprep.subr.mxu0 0.0
    %53 = vmatpush1.msra.mxu0 0.0
    %54 = vmatprep.subr.mxu0 0.0
    %55 = vmatpush1.msra.mxu0 0.0
    %56 = vmatprep.subr.mxu0 0.0
    %57 = vmatpush1.msra.mxu0 0.0
    %58 = vmatprep.subr.mxu0 0.0
    %59 = vmatpush1.msra.mxu0 0.0
    %60 = vmatprep.subr.mxu0 0.0
    %61 = vmatpush1.msra.mxu0 0.0
    %62 = vmatprep.subr.mxu0 0.0
    %63 = vmatpush1.msra.mxu0 0.0
    %64 = vmatprep.subr.mxu0 0.0
    %65 = vmatpush1.msra.mxu0 0.0
    %66 = vmatprep.subr.mxu0 0.0
    %67 = vmatpush1.msra.mxu0 0.0
    %68 = vmatprep.subr.mxu0 0.0
    %69 = vmatpush1.msra.mxu0 0.0
    %70 = vmatprep.subr.mxu0 0.0
    %71 = vmatpush1.msra.mxu0 0.0
    %72 = vmatprep.subr.mxu0 0.0
    %73 = vmatpush1.msra.mxu0 0.0
    %74 = vmatprep.subr.mxu0 0.0
    %75 = vmatpush1.msra.mxu0 0.0
    %76 = vmatprep.subr.mxu0 0.0
    %77 = vmatpush1.msra.mxu0 0.0
    %78 = vmatprep.subr.mxu0 0.0
    %79 = vmatpush1.msra.mxu0 0.0
    %80 = vmatprep.subr.mxu0 0.0
    %81 = vmatpush1.msra.mxu0 0.0
    %82 = vmatprep.subr.mxu0 0.0
    %83 = vmatpush1.msra.mxu0 0.0
    %84 = vmatprep.subr.mxu0 0.0
    %85 = vmatpush1.msra.mxu0 0.0
    %86 = vmatprep.subr.mxu0 0.0
    %87 = vmatpush1.msra.mxu0 0.0
    %88 = vmatprep.mubr.f32.mxu0 0.0
    %89 = vmatmul.mubr.f32.gmra.mrb[0].mxu0 %v22
    %v90 = vpop.f32.mrb[0].mxu0
    %v91 = vadd.f32 0.0, %v90
    %v92 = vpop.f32.mrb[0].mxu0
    %93 = vdwg.mxu0
    %v94 = vmax.f32 %v91, 0.0
    %v95 = vld [vmem:[%s2] sm:$0xff]
    %vm96 = vcmask 64512
    %v98 = vsel %vm96, %v94, 0
    %100 = vmatprep.subr.mxu0 0.0
    %101 = vmatpush1.msra.mxu0 %v95
    %102 = vmatprep.subr.mxu0 0.0
    %103 = vmatpush1.msra.mxu0 0.0
    %104 = vmatprep.subr.mxu0 0.0
    %105 = vmatpush1.msra.mxu0 0.0
    %106 = vmatprep.subr.mxu0 0.0
    %107 = vmatpush1.msra.mxu0 0.0
    %108 = vmatprep.subr.mxu0 0.0
    %109 = vmatpush1.msra.mxu0 0.0
    %110 = vmatprep.subr.mxu0 0.0
    %111 = vmatpush1.msra.mxu0 0.0
    %112 = vmatprep.subr.mxu0 0.0
    %113 = vmatpush1.msra.mxu0 0.0
    %114 = vmatprep.subr.mxu0 0.0
    %115 = vmatpush1.msra.mxu0 0.0
    %116 = vmatprep.subr.mxu0 0.0
    %117 = vmatpush1.msra.mxu0 0.0
    %118 = vmatprep.subr.mxu0 0.0
    %119 = vmatpush1.msra.mxu0 0.0
    %120 = vmatprep.subr.mxu0 0.0
    %121 = vmatpush1.msra.mxu0 0.0
    %122 = vmatprep.subr.mxu0 0.0
    %123 = vmatpush1.msra.mxu0 0.0
    %124 = vmatprep.subr.mxu0 0.0
    %125 = vmatpush1.msra.mxu0 0.0
    %126 = vmatprep.subr.mxu0 0.0
    %127 = vmatpush1.msra.mxu0 0.0
    %128 = vmatprep.subr.mxu0 0.0
    %129 = vmatpush1.msra.mxu0 0.0
    %130 = vmatprep.subr.mxu0 0.0
    %131 = vmatpush1.msra.mxu0 0.0
    %132 = vmatprep.subr.mxu0 0.0
    %133 = vmatpush1.msra.mxu0 0.0
    %134 = vmatprep.subr.mxu0 0.0
    %135 = vmatpush1.msra.mxu0 0.0
    %136 = vmatprep.subr.mxu0 0.0
    %137 = vmatpush1.msra.mxu0 0.0
    %138 = vmatprep.subr.mxu0 0.0
    %139 = vmatpush1.msra.mxu0 0.0
    %140 = vmatprep.subr.mxu0 0.0
    %141 = vmatpush1.msra.mxu0 0.0
    %142 = vmatprep.subr.mxu0 0.0
    %143 = vmatpush1.msra.mxu0 0.0
    %144 = vmatprep.subr.mxu0 0.0
    %145 = vmatpush1.msra.mxu0 0.0
    %146 = vmatprep.subr.mxu0 0.0
    %147 = vmatpush1.msra.mxu0 0.0
    %148 = vmatprep.subr.mxu0 0.0
    %149 = vmatpush1.msra.mxu0 0.0
    %150 = vmatprep.subr.mxu0 0.0
    %151 = vmatpush1.msra.mxu0 0.0
    %152 = vmatprep.subr.mxu0 0.0
    %153 = vmatpush1.msra.mxu0 0.0
    %154 = vmatprep.subr.mxu0 0.0
    %155 = vmatpush1.msra.mxu0 0.0
    %156 = vmatprep.subr.mxu0 0.0
    %157 = vmatpush1.msra.mxu0 0.0
    %158 = vmatprep.subr.mxu0 0.0
    %159 = vmatpush1.msra.mxu0 0.0
    %160 = vmatprep.subr.mxu0 0.0
    %161 = vmatpush1.msra.mxu0 0.0
    %162 = vmatprep.subr.mxu0 0.0
    %163 = vmatpush1.msra.mxu0 0.0
    %164 = vmatprep.mubr.f32.mxu0 0.0
    %165 = vmatmul.mubr.f32.gmra.mrb[0].mxu0 %v98
    %v166 = vpop.f32.mrb[0].mxu0
    %v167 = vadd.f32 0.0, %v166
    %v168 = vpop.f32.mrb[0].mxu0
    %169 = vdwg.mxu0
    %v170 = vmax.f32 %v167, 0.0
    %171 = vst.msk [vmem:[#allocation2] sm:$0xff] %vm20, %v170
    // Predicated region
    $region14: #{adapter_forward.1} parent=1 // pred_check
      _
    $region15: #{adapter_forward.1} parent=1 // pred_check_branch
      %173 = sbr.rel (0) target = $region17
    $region16: #{adapter_forward.1} parent=1 // pred_region
      %s175 = ssub.s32 128, 128
      %176 = vsyncadd [#allocation3], %s175
      %s178 = sshll.u32 [#allocation2], 4
      %s179 = int_to_ptr.vmem [resolvable:$true] %s178
      %181 = dma.vmem_to_hbm [thread:$0]  %s179, 128, %s3, [#allocation3]
    $region17: #{adapter_forward.1} parent=1 // pred_fallthru
      _
    // Predicated region
    $region18: #{adapter_forward.1} parent=1 // pred_check
      _
    $region19: #{adapter_forward.1} parent=1 // pred_check_branch
      %183 = sbr.rel (0) target = $region21
    $region20: #{adapter_forward.1} parent=1 // pred_region
      %184 = dma.done [#allocation3], 128
    $region21: #{adapter_forward.1} parent=1 // pred_fallthru
      _
    %185 = vsyncpa [#allocation3], 1

</llo_original>
